<compile_context>
chip_gen: v6e
topology: v6e:2x2x1
jax: 0.10.0
libtpu: 0.0.40
codegen_flags: <defaults>
</compile_context>

<pallas_src>
import jax
import jax.numpy as jnp
from jax.experimental import pallas as pl
from jax.experimental.pallas import tpu as pltpu

NUM_DOMAIN = 3

_TB_MAX = 8192                      # max packed-batch rows per grid step
_VMEM_LIMIT = 32 * 1024 * 1024      # scoped VMEM budget (safe on v5e/v6e/v7x)
_PALLAS_MIN_ROWS = 512              # below this, fused XLA dot beats a kernel launch


def _round_up(x, m):
    return ((x + m - 1) // m) * m


def _dir_mixup_kernel(lm_ref, cen_ref, out_ref):
    # Tiny-K contraction on the MXU (vector-extended slot, otherwise idle):
    # this makes the kernel DMA-bound on the output writeback.
    out_ref[...] = jnp.dot(
        lm_ref[...], cen_ref[...], preferred_element_type=jnp.float32
    ).astype(out_ref.dtype)


def _pack_centers(centers, G):
    """kron(I_G, centers): block-diagonal centroid replication for lane packing.

    Static across grid steps; if centers are reused across many forward calls,
    precompute/cache this on the caller side (XLA also CSEs it within one trace).
    """
    return jnp.kron(jnp.eye(G, dtype=centers.dtype), centers)


def _mixed_x_pallas(lmdas, centers):
    """mixed_x = lmdas @ centers, via a gridded, lane-dense MXU kernel."""
    B, D = lmdas.shape
    Dc, C = centers.shape
    assert D == Dc
    lmdas = lmdas.astype(jnp.float32)
    centers = centers.astype(jnp.float32)

    # Tiny problems: the pallas_call dispatch + per-step overhead dwarfs the
    # work; let XLA fuse the contraction for free.
    if B < _PALLAS_MIN_ROWS:
        return lmdas @ centers

    # Lane packing: fold G consecutive batch rows onto the lane axis so the
    # output tile's last dim is 128 -> unmasked `vst` instead of masked partials.
    G = 128 // C if (C < 128 and 128 % C == 0) else 1
    if G > 1:
        pad = (-B) % G
        lm = jnp.pad(lmdas, ((0, pad), (0, 0))) if pad else lmdas
        lm = lm.reshape((B + pad) // G, G * D)           # (Bp, G*D)
        cen = _pack_centers(centers, G)                  # (G*D, G*C)
    else:
        lm, cen = lmdas, centers
    Bp, Dp = lm.shape
    Cp = cen.shape[1]

    # Pad the contraction dim to a sublane multiple (zero rows/cols -> result
    # unchanged); keeps the MXU operand layouts aligned. lm rows stay tiny
    # (<= 64 B): that DMA's descriptor overhead is second-order vs the output.
    Kp = _round_up(Dp, 8)
    if Kp != Dp:
        lm = jnp.pad(lm, ((0, 0), (0, Kp - Dp)))
        cen = jnp.pad(cen, ((0, Kp - Dp), (0, 0)))

    # Tile the (packed) batch axis:
    #  * cap the double-buffered (in + out) footprint at ~75% of the VMEM budget
    #    (matters when C is large and there is no lane packing),
    #  * force >= 2 grid steps so v7x's two TensorCores both engage,
    #  * keep everything a multiple of 8 rows (sublane granularity).
    bytes_per_row = 2 * 4 * (Kp + Cp)                    # double-buffered f32
    tb_vmem = max(8, (((3 * _VMEM_LIMIT) // 4) // bytes_per_row) // 8 * 8)
    tb_split = _round_up(pl.cdiv(Bp, 2), 8)
    TB = max(8, min(_TB_MAX, tb_vmem, tb_split, _round_up(Bp, 8)))

    # Pad rows to a whole number of tiles (zero rows -> zero outputs, sliced off).
    Bp_pad = _round_up(Bp, TB)
    if Bp_pad != Bp:
        lm = jnp.pad(lm, ((0, Bp_pad - Bp), (0, 0)))
    grid = (Bp_pad // TB,)

    out = pl.pallas_call(
        _dir_mixup_kernel,
        out_shape=jax.ShapeDtypeStruct((Bp_pad, Cp), jnp.float32),
        grid=grid,
        in_specs=[
            pl.BlockSpec((TB, Kp), lambda i: (i, 0)),
            pl.BlockSpec((Kp, Cp), lambda i: (0, 0)),    # same centroid block every step
        ],
        out_specs=pl.BlockSpec((TB, Cp), lambda i: (i, 0)),
        compiler_params=pltpu.CompilerParams(
            dimension_semantics=("parallel",),           # 2 TCs on v7x; no-op v5e/v6e
            vmem_limit_bytes=_VMEM_LIMIT,
        ),
    )(lm, cen)

    if G > 1:
        out = out.reshape(Bp_pad * G, C)[:B]
    else:
        out = out[:B]
    return out


def dirchlet_mixup_forward(x, y, centers, lmdas):
    """Mirrors Dirchlet_Mixup.forward(x, y, centers=centers) with style='dir'.

    x: (B, C, H, W)  -- only B and C are consumed (exactly as in the PyTorch module)
    y: (B,)          -- torch.unique(y) is computed but unused in the original
    centers: (num_domain, C)
    lmdas: (B, num_domain)  pre-sampled Dirichlet weights
    Returns (mixed_x (B, C) f32, mixed_y (B, num_domain) f32, 1).
    """
    # TODO(synk): torch.unique(y, return_counts=True) is computed but never used
    # in the original forward, so it is intentionally skipped here.
    del y
    B, C = x.shape[0], x.shape[1]
    assert lmdas.shape == (B, NUM_DOMAIN) and centers.shape == (NUM_DOMAIN, C)

    mixed_x = _mixed_x_pallas(lmdas, centers)
    # target = one_hot([0,1,2]) = I_3  =>  mixed_y = lmdas @ I_3 = lmdas (exact).
    mixed_y = lmdas.astype(jnp.float32)
    return mixed_x, mixed_y, 1


if __name__ == "__main__":
    key = jax.random.PRNGKey(0)
    k_x1, k_c, k_d1, k_x2, k_d2 = jax.random.split(key, 5)

    num_domain = NUM_DOMAIN
    alpha = 5.0

    # ---- Case 1: module-sized demo (batch_size=2 per domain -> B=6). ----
    # Too small to pay for a kernel launch; takes the fused-XLA fallback path.
    batch_size = 2
    B1, C1, H1, W1 = batch_size * num_domain, 32, 16, 16
    x1 = jax.random.normal(k_x1, (B1, C1, H1, W1), dtype=jnp.float32)      # NCHW
    y1 = jnp.repeat(jnp.arange(num_domain, dtype=jnp.int32), batch_size)
    centers = jax.random.normal(k_c, (num_domain, C1), dtype=jnp.float32)
    lmdas1 = jax.random.dirichlet(
        k_d1, jnp.full((num_domain,), alpha, jnp.float32), shape=(B1,)
    ).astype(jnp.float32)
    mx1, my1, lam1 = dirchlet_mixup_forward(x1, y1, centers, lmdas1)

    # ---- Case 2: larger batch that exercises the Pallas MXU kernel path. ----
    B2, C2 = 1536, 32
    x2 = jax.random.normal(k_x2, (B2, C2, 2, 2), dtype=jnp.float32)
    y2 = jnp.repeat(jnp.arange(num_domain, dtype=jnp.int32), B2 // num_domain)
    lmdas2 = jax.random.dirichlet(
        k_d2, jnp.full((num_domain,), alpha, jnp.float32), shape=(B2,)
    ).astype(jnp.float32)
    mx2, my2, lam2 = dirchlet_mixup_forward(x2, y2, centers, lmdas2)

    jax.block_until_ready((mx1, my1, mx2, my2))

    # Pure-JAX references of the PyTorch semantics.
    eye = jnp.eye(num_domain, dtype=jnp.float32)
    for (mx, my, lam, lmd, B, C) in (
        (mx1, my1, lam1, lmdas1, B1, C1),
        (mx2, my2, lam2, lmdas2, B2, C2),
    ):
        ref_x = (centers[None, :, :] * lmd[:, :, None]).sum(axis=1)
        ref_y = (eye[None, :, :] * lmd[:, :, None]).sum(axis=1)
        assert mx.shape == (B, C) and my.shape == (B, num_domain)
        assert jnp.allclose(mx, ref_x, atol=1e-4, rtol=1e-4)
        assert jnp.allclose(my, ref_y, atol=1e-6)
        assert lam == 1

    print("KERNEL_OK")
</pallas_src>

<mosaic_0001>
module attributes {stable_mosaic.version = 11 : i64} {
  func.func @_dir_mixup_kernel(%arg0: i32, %arg1: memref<192x16xf32, #tpu.memory_space<vmem>>, %arg2: memref<16x128xf32, #tpu.memory_space<vmem>>, %arg3: memref<192x128xf32, #tpu.memory_space<vmem>>) attributes {dimension_semantics = [#tpu.dimension_semantics<parallel>], iteration_bounds = array<i64: 2>, scalar_prefetch = 0 : i64, scratch_operands = 0 : i64, tpu.core_type = #tpu.core_type<tc>, window_params = [{transform_indices = @transform_0, window_bounds = array<i64: 192, 16>}, {pipeline_mode = #tpu.pipeline_mode<synchronous>, transform_indices = @transform_1, window_bounds = array<i64: 16, 128>}, {transform_indices = @transform_2, window_bounds = array<i64: 192, 128>}]} {
    %c0 = arith.constant 0 : index
    %c0_0 = arith.constant 0 : index
    %0 = vector.load %arg1[%c0, %c0_0] : memref<192x16xf32, #tpu.memory_space<vmem>>, vector<192x16xf32>
    %c0_1 = arith.constant 0 : index
    %c0_2 = arith.constant 0 : index
    %1 = vector.load %arg2[%c0_1, %c0_2] : memref<16x128xf32, #tpu.memory_space<vmem>>, vector<16x128xf32>
    %cst = arith.constant dense<0.000000e+00> : vector<192x128xf32>
    %2 = tpu.matmul %0, %1, %cst {dimension_numbers = #tpu.dot_dimension_numbers<[1], [0], [0], [1], [0, 0, 1, 1], [], []>} : vector<192x16xf32>, vector<16x128xf32>, vector<192x128xf32> -> vector<192x128xf32>
    %c0_3 = arith.constant 0 : index
    %c0_4 = arith.constant 0 : index
    %3 = vector.load %arg3[%c0_3, %c0_4] : memref<192x128xf32, #tpu.memory_space<vmem>>, vector<192x128xf32>
    tpu.vector_store %arg3[%c0_3, %c0_4], %2 {strides = array<i32>} : memref<192x128xf32, #tpu.memory_space<vmem>>, vector<192x128xf32>,
    return
  }
  func.func @transform_0(%arg0: i32) -> (i32, i32) {
    %c0_i32 = arith.constant 0 : i32
    %c0_i32_0 = arith.constant 0 : i32
    return %arg0, %c0_i32 : i32, i32
  }
  func.func @transform_1(%arg0: i32) -> (i32, i32) {
    %c0_i32 = arith.constant 0 : i32
    %c0_i32_0 = arith.constant 0 : i32
    %c0_i32_1 = arith.constant 0 : i32
    return %c0_i32, %c0_i32_0 : i32, i32
  }
  func.func @transform_2(%arg0: i32) -> (i32, i32) {
    %c0_i32 = arith.constant 0 : i32
    %c0_i32_0 = arith.constant 0 : i32
    return %arg0, %c0_i32 : i32, i32
  }
}

</mosaic_0001>

<llo_original>
// kernel: tpu_custom_call.1
$region0: #{tpu_custom_call.1}
  #allocation0 [shape = 'u32[]', space=smem, size = 0x4, offset = 0x4, fixed_abs, tag = 'smem constant byte address 0x4 - core index']
  #allocation1 [shape = 'u32[144,128]{1,0:T(1,128)}', space=vmem, size = 0x12000, scoped, tag = 'internal scratch']
  %s0 = inlined_call_operand.vmem [shape: f32[384,16], index: 0, kind: input, shape index: {}]
  %s1 = inlined_call_operand.vmem [shape: f32[16,128], index: 1, kind: input, shape index: {}]
  %s2 = inlined_call_operand.hbm [shape: f32[384,128], index: 2, kind: output, shape index: {}]
  %s3 = sld [smem:[#allocation0]]
  $region41: #{tpu_custom_call.1} parent=0
    _
  %s5 = ssub.s32 1, %s3
  %s6 = scalar_select 0, %s5, %s3
  $region1: #{tpu_custom_call.1} parent=0
    #allocation2 [shape = 'u8[196608]{0}', space=vmem, size = 0x30000, scoped, tag = 'output window, operand 0']
    #allocation3 [shape = 's32[2]{0}', space=sflag, size = 0x8, scoped, tag = 'scoped memory for tpu_custom_call.1']
    %7 = vsyncpa [#allocation3], 0
    %s8 = scalar_lea.sflag [#allocation3], 1
    %9 = vsyncpa %s8, 0
    loop: start=0, step=1, limit=4
    $region2: #{tpu_custom_call.1} parent=1 // loop_pre_header
      _
    $region3: #{tpu_custom_call.1} parent=1 // loop_header
      %s11 = sphi 0, %s15
      %p12 = scmp.ge.s32.totalorder %s11, 4
      %s21 = sphi 0, %s23
      %s24 = sphi 0, %s21
      %s25 = sphi 0, %s24
      %s41 = sphi 0, %s25
      %s45 = sphi 0, %s45
      %s47 = sphi 0, %s45
      %s48 = sphi 0, %s47
      %s62 = sphi 0, %s48
      %s68 = sphi 0, %s70
      %s71 = sphi 0, %s68
      %s72 = sphi 0, %s71
      %s88 = sphi 0, %s72
    $region4: #{tpu_custom_call.1} parent=1 // loop_header_branch
      %14 = sbr.rel (%p12) target = $region8
    $region5: #{tpu_custom_call.1} parent=1 // loop_body
      %s16 = ssub.s32 %s11, 1
      %s17 = ssub.s32 %s11, 2
      %s18 = sadd.s32 %s11, 1
      %s19 = ssub.s32 %s11, %s18
      %p20 = scmp.eq.s32.totalorder %s19, 0
      %s22 = sadd.s32 %s21, 1
      %s23 = scalar_select %p20, %s21, %s22
      %p26 = pneg %p20
      %p27 = scmp.eq.s32.totalorder %s11, 1
      %p28 = por %p26, %p27
      %p29 = scmp.ne.s32.totalorder %s21, %s24
      %p30 = scmp.eq.s32.totalorder %s11, 0
      %p31 = por %p29, %p30
      %p32 = scmp.ne.s32.totalorder %s21, %s24
      %p33 = scmp.eq.s32.totalorder %s16, 1
      %p34 = por %p32, %p33
      %p35 = scmp.ne.s32.totalorder %s24, %s25
      %p36 = scmp.eq.s32.totalorder %s16, 0
      %p37 = por %p35, %p36
      %p38 = scmp.ne.s32.totalorder %s24, %s25
      %p39 = scmp.eq.s32.totalorder %s17, 1
      %p40 = por %p38, %p39
      %p42 = scmp.ne.s32.totalorder %s25, %s41
      %p43 = scmp.eq.s32.totalorder %s17, 0
      %p44 = por %p42, %p43
      %s46 = sadd.s32 %s45, 1
      %p49 = scmp.eq.s32.totalorder %s11, 1
      %p50 = scmp.ne.s32.totalorder %s45, %s47
      %p51 = scmp.eq.s32.totalorder %s11, 0
      %p52 = por %p50, %p51
      %p53 = scmp.ne.s32.totalorder %s45, %s47
      %p54 = scmp.eq.s32.totalorder %s16, 1
      %p55 = por %p53, %p54
      %p56 = scmp.ne.s32.totalorder %s47, %s48
      %p57 = scmp.eq.s32.totalorder %s16, 0
      %p58 = por %p56, %p57
      %p59 = scmp.ne.s32.totalorder %s47, %s48
      %p60 = scmp.eq.s32.totalorder %s17, 1
      %p61 = por %p59, %p60
      %p63 = scmp.ne.s32.totalorder %s48, %s62
      %p64 = scmp.eq.s32.totalorder %s17, 0
      %p65 = por %p63, %p64
      %s66 = ssub.s32 %s11, %s18
      %p67 = scmp.eq.s32.totalorder %s66, 0
      %s69 = sadd.s32 %s68, 1
      %s70 = scalar_select %p67, %s68, %s69
      %p73 = pneg %p67
      %p74 = scmp.eq.s32.totalorder %s11, 1
      %p75 = por %p73, %p74
      %p76 = scmp.ne.s32.totalorder %s68, %s71
      %p77 = scmp.eq.s32.totalorder %s11, 0
      %p78 = por %p76, %p77
      %p79 = scmp.ne.s32.totalorder %s68, %s71
      %p80 = scmp.eq.s32.totalorder %s16, 1
      %p81 = por %p79, %p80
      %p82 = scmp.ne.s32.totalorder %s71, %s72
      %p83 = scmp.eq.s32.totalorder %s16, 0
      %p84 = por %p82, %p83
      %p85 = scmp.ne.s32.totalorder %s71, %s72
      %p86 = scmp.eq.s32.totalorder %s17, 1
      %p87 = por %p85, %p86
      %p89 = scmp.ne.s32.totalorder %s72, %s88
      %p90 = scmp.eq.s32.totalorder %s17, 0
      %p91 = por %p89, %p90
      %p92 = scmp.le.s32.totalorder 1, %s11
      %p93 = scmp.lt.s32.totalorder %s11, 3
      %p94 = pnand %p92, %p93
      %p95 = pneg %p94
      // Predicated region
      $region9: #{tpu_custom_call.1} parent=5 // pred_check
        _
      $region10: #{tpu_custom_call.1} parent=5 // pred_check_branch
        %97 = sbr.rel (%p94) target = $region12
      $region11: #{tpu_custom_call.1} parent=5 // pred_region
        %s98 = ssub.s32 %s11, 1
        // Predicated region
        $region13: #{tpu_custom_call.1} parent=11 // pred_check
          %p99 = pneg %p58
        $region14: #{tpu_custom_call.1} parent=11 // pred_check_branch
          %101 = sbr.rel (%p99) target = $region16
        $region15: #{tpu_custom_call.1} parent=11 // pred_region
          _
        $region16: #{tpu_custom_call.1} parent=11 // pred_fallthru
          _
      $region12: #{tpu_custom_call.1} parent=5 // pred_fallthru
        _
      %p102 = scmp.lt.s32.totalorder %s11, 2
      // Predicated region
      $region17: #{tpu_custom_call.1} parent=5 // pred_check
        %p103 = pneg %p102
      $region18: #{tpu_custom_call.1} parent=5 // pred_check_branch
        %105 = sbr.rel (%p103) target = $region20
      $region19: #{tpu_custom_call.1} parent=5 // pred_region
        // Predicated region
        $region21: #{tpu_custom_call.1} parent=19 // pred_check
          %p106 = pneg %p31
        $region22: #{tpu_custom_call.1} parent=19 // pred_check_branch
          %108 = sbr.rel (%p106) target = $region24
        $region23: #{tpu_custom_call.1} parent=19 // pred_region
          %s109 = smul.u32 24, %s11
          %p110 = scmp.lt.s32.totalorder %s109, 47
          %s111 = scalar_select %p110, %s109, 47
          %s112 = smul.addr %s111, 8
          %s113 = scalar_lea.vmem %s0, %s112
          %s114 = smul.u32 24, %s11
        $region24: #{tpu_custom_call.1} parent=19 // pred_fallthru
          _
      $region20: #{tpu_custom_call.1} parent=5 // pred_fallthru
        _
      %p115 = scmp.le.s32.totalorder 1, %s11
      %p116 = scmp.lt.s32.totalorder %s11, 3
      %p117 = pnand %p115, %p116
      %p118 = pneg %p117
      // Predicated region
      $region25: #{tpu_custom_call.1} parent=5 // pred_check
        _
      $region26: #{tpu_custom_call.1} parent=5 // pred_check_branch
        %120 = sbr.rel (%p117) target = $region28
      $region27: #{tpu_custom_call.1} parent=5 // pred_region
        %s121 = ssub.s32 %s11, 1
        %s122 = smul.u32 24, %s16
        %p123 = scmp.lt.s32.totalorder %s122, 47
        %s124 = scalar_select %p123, %s122, 47
        %s125 = smul.addr %s124, 8
        %s126 = scalar_lea.vmem %s0, %s125
        %p127 = pneg %p37
        %p128 = pneg %p34
        %p129 = pneg %p58
        %p130 = pneg %p55
        %p131 = pneg %p84
        %p132 = pneg %p81
        %s133 = sand.u32 %s71, 1
        %s134 = scalar_lea.sflag [#allocation3], %s133
        %s135 = sand.u32 %s71, 1
        %s136 = smul.addr %s135, 192
        %s137 = scalar_lea.vmem [#allocation2], %s136
        %s138 = smul.u32 24, %s16
        %p139 = scmp.lt.s32.totalorder %s138, 47
        %s140 = scalar_select %p139, %s138, 47
        %s141 = smul.addr %s140, 8
        %s142 = scalar_lea.vmem %s0, %s141
        %s143 = smul.u32 24, %s16
        %s144 = smul.u32 24, %s16
        %v145 = vld [vmem:[%s142] sm:$0xff]
        %v146 = vld [vmem:[%s142 + $0x8] sm:$0xff]
        %v147 = vld [vmem:[%s142 + $0x10] sm:$0xff]
        %v148 = vld [vmem:[%s142 + $0x18] sm:$0xff]
        %v149 = vld [vmem:[%s142 + $0x20] sm:$0xff]
        %v150 = vld [vmem:[%s142 + $0x28] sm:$0xff]
        %v151 = vld [vmem:[%s142 + $0x30] sm:$0xff]
        %v152 = vld [vmem:[%s142 + $0x38] sm:$0xff]
        %v153 = vld [vmem:[%s142 + $0x40] sm:$0xff]
        %v154 = vld [vmem:[%s142 + $0x48] sm:$0xff]
        %v155 = vld [vmem:[%s142 + $0x50] sm:$0xff]
        %v156 = vld [vmem:[%s142 + $0x58] sm:$0xff]
        %v157 = vld [vmem:[%s142 + $0x60] sm:$0xff]
        %v158 = vld [vmem:[%s142 + $0x68] sm:$0xff]
        %v159 = vld [vmem:[%s142 + $0x70] sm:$0xff]
        %v160 = vld [vmem:[%s142 + $0x78] sm:$0xff]
        %v161 = vld [vmem:[%s142 + $0x80] sm:$0xff]
        %v162 = vld [vmem:[%s142 + $0x88] sm:$0xff]
        %v163 = vld [vmem:[%s142 + $0x90] sm:$0xff]
        %v164 = vld [vmem:[%s142 + $0x98] sm:$0xff]
        %v165 = vld [vmem:[%s142 + $0xa0] sm:$0xff]
        %v166 = vld [vmem:[%s142 + $0xa8] sm:$0xff]
        %v167 = vld [vmem:[%s142 + $0xb0] sm:$0xff]
        %v168 = vld [vmem:[%s142 + $0xb8] sm:$0xff]
        %v169 = vld [vmem:[%s1] sm:$0xff]
        %v170 = vld [vmem:[%s1 + $0x8] sm:$0xff]
        %vm171 = vcmask 130048
        %v173 = vsel %vm171, %v145, 0
        %v176 = vsel %vm171, %v146, 0
        %v179 = vsel %vm171, %v147, 0
        %v182 = vsel %vm171, %v148, 0
        %v185 = vsel %vm171, %v149, 0
        %v188 = vsel %vm171, %v150, 0
        %v191 = vsel %vm171, %v151, 0
        %v194 = vsel %vm171, %v152, 0
        %v197 = vsel %vm171, %v153, 0
        %v200 = vsel %vm171, %v154, 0
        %v203 = vsel %vm171, %v155, 0
        %v206 = vsel %vm171, %v156, 0
        %v209 = vsel %vm171, %v157, 0
        %v212 = vsel %vm171, %v158, 0
        %v215 = vsel %vm171, %v159, 0
        %v218 = vsel %vm171, %v160, 0
        %v221 = vsel %vm171, %v161, 0
        %v224 = vsel %vm171, %v162, 0
        %v227 = vsel %vm171, %v163, 0
        %v230 = vsel %vm171, %v164, 0
        %v233 = vsel %vm171, %v165, 0
        %v236 = vsel %vm171, %v166, 0
        %v239 = vsel %vm171, %v167, 0
        %v242 = vsel %vm171, %v168, 0
        %244 = vmatprep.subr.mxu0 0.0
        %245 = vmatpush1.msra.mxu0 0.0
        %246 = vmatprep.subr.mxu0 0.0
        %247 = vmatpush1.msra.mxu0 0.0
        %248 = vmatprep.subr.mxu0 0.0
        %249 = vmatpush1.msra.mxu0 0.0
        %250 = vmatprep.subr.mxu0 0.0
        %251 = vmatpush1.msra.mxu0 0.0
        %252 = vmatprep.subr.mxu0 0.0
        %253 = vmatpush1.msra.mxu0 0.0
        %254 = vmatprep.subr.mxu0 0.0
        %255 = vmatpush1.msra.mxu0 0.0
        %256 = vmatprep.subr.mxu0 0.0
        %257 = vmatpush1.msra.mxu0 0.0
        %258 = vmatprep.subr.mxu0 0.0
        %259 = vmatpush1.msra.mxu0 0.0
        %260 = vmatprep.subr.mxu0 0.0
        %261 = vmatpush1.msra.mxu0 0.0
        %262 = vmatprep.subr.mxu0 0.0
        %263 = vmatpush1.msra.mxu0 0.0
        %264 = vmatprep.subr.mxu0 0.0
        %265 = vmatpush1.msra.mxu0 0.0
        %266 = vmatprep.subr.mxu0 0.0
        %267 = vmatpush1.msra.mxu0 0.0
        %268 = vmatprep.subr.mxu0 0.0
        %269 = vmatpush1.msra.mxu0 0.0
        %270 = vmatprep.subr.mxu0 0.0
        %271 = vmatpush1.msra.mxu0 0.0
        %272 = vmatprep.subr.mxu0 0.0
        %273 = vmatpush1.msra.mxu0 %v170
        %274 = vmatprep.subr.mxu0 0.0
        %275 = vmatpush1.msra.mxu0 %v169
        %276 = vmatprep.subr.mxu0 0.0
        %277 = vmatpush2.msra.mxu0 0.0
        %278 = vmatprep.subr.mxu0 0.0
        %279 = vmatpush2.msra.mxu0 0.0
        %280 = vmatprep.subr.mxu0 0.0
        %281 = vmatpush2.msra.mxu0 0.0
        %282 = vmatprep.subr.mxu0 0.0
        %283 = vmatpush2.msra.mxu0 0.0
        %284 = vmatprep.subr.mxu0 0.0
        %285 = vmatpush2.msra.mxu0 0.0
        %286 = vmatprep.subr.mxu0 0.0
        %287 = vmatpush2.msra.mxu0 0.0
        %288 = vmatprep.subr.mxu0 0.0
        %289 = vmatpush2.msra.mxu0 0.0
        %290 = vmatprep.subr.mxu0 0.0
        %291 = vmatpush2.msra.mxu0 0.0
        %292 = vmatprep.subr.mxu0 0.0
        %293 = vmatpush2.msra.mxu0 0.0
        %294 = vmatprep.subr.mxu0 0.0
        %295 = vmatpush2.msra.mxu0 0.0
        %296 = vmatprep.subr.mxu0 0.0
        %297 = vmatpush2.msra.mxu0 0.0
        %298 = vmatprep.subr.mxu0 0.0
        %299 = vmatpush2.msra.mxu0 0.0
        %300 = vmatprep.subr.mxu0 0.0
        %301 = vmatpush2.msra.mxu0 0.0
        %302 = vmatprep.subr.mxu0 0.0
        %303 = vmatpush2.msra.mxu0 0.0
        %304 = vmatprep.subr.mxu0 0.0
        %305 = vmatpush2.msra.mxu0 0.0
        %306 = vmatprep.subr.mxu0 0.0
        %307 = vmatpush2.msra.mxu0 0.0
        %308 = vmatprep.mubr.f32.mxu0 0.0
        %309 = vmatmul.mubr.f32.gmra.mxu0 %v173
        %v310 = vpop.f32.mrf.mxu0
        %v311 = vadd.f32 0.0, %v310
        %v312 = vpop.f32.mrf.mxu0
        %313 = vmatprep.mubr.f32.mxu0 0.0
        %314 = vmatmul.mubr.f32.gmra.mxu0 %v176
        %v315 = vpop.f32.mrf.mxu0
        %v316 = vadd.f32 0.0, %v315
        %v317 = vpop.f32.mrf.mxu0
        %318 = vmatprep.mubr.f32.mxu0 0.0
        %319 = vmatmul.mubr.f32.gmra.mxu0 %v179
        %v320 = vpop.f32.mrf.mxu0
        %v321 = vadd.f32 0.0, %v320
        %v322 = vpop.f32.mrf.mxu0
        %323 = vmatprep.mubr.f32.mxu0 0.0
        %324 = vmatmul.mubr.f32.gmra.mxu0 %v182
        %v325 = vpop.f32.mrf.mxu0
        %v326 = vadd.f32 0.0, %v325
        %v327 = vpop.f32.mrf.mxu0
        %328 = vmatprep.mubr.f32.mxu0 0.0
        %329 = vmatmul.mubr.f32.gmra.mxu0 %v185
        %v330 = vpop.f32.mrf.mxu0
        %v331 = vadd.f32 0.0, %v330
        %v332 = vpop.f32.mrf.mxu0
        %333 = vmatprep.mubr.f32.mxu0 0.0
        %334 = vmatmul.mubr.f32.gmra.mxu0 %v188
        %v335 = vpop.f32.mrf.mxu0
        %v336 = vadd.f32 0.0, %v335
        %v337 = vpop.f32.mrf.mxu0
        %338 = vmatprep.mubr.f32.mxu0 0.0
        %339 = vmatmul.mubr.f32.gmra.mxu0 %v191
        %v340 = vpop.f32.mrf.mxu0
        %v341 = vadd.f32 0.0, %v340
        %v342 = vpop.f32.mrf.mxu0
        %343 = vmatprep.mubr.f32.mxu0 0.0
        %344 = vmatmul.mubr.f32.gmra.mxu0 %v194
        %v345 = vpop.f32.mrf.mxu0
        %v346 = vadd.f32 0.0, %v345
        %v347 = vpop.f32.mrf.mxu0
        %348 = vmatprep.mubr.f32.mxu0 0.0
        %349 = vmatmul.mubr.f32.gmra.mxu0 %v197
        %v350 = vpop.f32.mrf.mxu0
        %v351 = vadd.f32 0.0, %v350
        %v352 = vpop.f32.mrf.mxu0
        %353 = vmatprep.mubr.f32.mxu0 0.0
        %354 = vmatmul.mubr.f32.gmra.mxu0 %v200
        %v355 = vpop.f32.mrf.mxu0
        %v356 = vadd.f32 0.0, %v355
        %v357 = vpop.f32.mrf.mxu0
        %358 = vmatprep.mubr.f32.mxu0 0.0
        %359 = vmatmul.mubr.f32.gmra.mxu0 %v203
        %v360 = vpop.f32.mrf.mxu0
        %v361 = vadd.f32 0.0, %v360
        %v362 = vpop.f32.mrf.mxu0
        %363 = vmatprep.mubr.f32.mxu0 0.0
        %364 = vmatmul.mubr.f32.gmra.mxu0 %v206
        %v365 = vpop.f32.mrf.mxu0
        %v366 = vadd.f32 0.0, %v365
        %v367 = vpop.f32.mrf.mxu0
        %368 = vmatprep.mubr.f32.mxu0 0.0
        %369 = vmatmul.mubr.f32.gmra.mxu0 %v209
        %v370 = vpop.f32.mrf.mxu0
        %v371 = vadd.f32 0.0, %v370
        %v372 = vpop.f32.mrf.mxu0
        %373 = vmatprep.mubr.f32.mxu0 0.0
        %374 = vmatmul.mubr.f32.gmra.mxu0 %v212
        %v375 = vpop.f32.mrf.mxu0
        %v376 = vadd.f32 0.0, %v375
        %v377 = vpop.f32.mrf.mxu0
        %378 = vmatprep.mubr.f32.mxu0 0.0
        %379 = vmatmul.mubr.f32.gmra.mxu0 %v215
        %v380 = vpop.f32.mrf.mxu0
        %v381 = vadd.f32 0.0, %v380
        %v382 = vpop.f32.mrf.mxu0
        %383 = vmatprep.mubr.f32.mxu0 0.0
        %384 = vmatmul.mubr.f32.gmra.mxu0 %v218
        %v385 = vpop.f32.mrf.mxu0
        %v386 = vadd.f32 0.0, %v385
        %v387 = vpop.f32.mrf.mxu0
        %388 = vmatprep.mubr.f32.mxu0 0.0
        %389 = vmatmul.mubr.f32.gmra.mxu0 %v221
        %v390 = vpop.f32.mrf.mxu0
        %v391 = vadd.f32 0.0, %v390
        %v392 = vpop.f32.mrf.mxu0
        %393 = vmatprep.mubr.f32.mxu0 0.0
        %394 = vmatmul.mubr.f32.gmra.mxu0 %v224
        %v395 = vpop.f32.mrf.mxu0
        %v396 = vadd.f32 0.0, %v395
        %v397 = vpop.f32.mrf.mxu0
        %398 = vmatprep.mubr.f32.mxu0 0.0
        %399 = vmatmul.mubr.f32.gmra.mxu0 %v227
        %v400 = vpop.f32.mrf.mxu0
        %v401 = vadd.f32 0.0, %v400
        %v402 = vpop.f32.mrf.mxu0
        %403 = vmatprep.mubr.f32.mxu0 0.0
        %404 = vmatmul.mubr.f32.gmra.mxu0 %v230
        %v405 = vpop.f32.mrf.mxu0
        %v406 = vadd.f32 0.0, %v405
        %v407 = vpop.f32.mrf.mxu0
        %408 = vmatprep.mubr.f32.mxu0 0.0
        %409 = vmatmul.mubr.f32.gmra.mxu0 %v233
        %v410 = vpop.f32.mrf.mxu0
        %v411 = vadd.f32 0.0, %v410
        %v412 = vpop.f32.mrf.mxu0
        %413 = vmatprep.mubr.f32.mxu0 0.0
        %414 = vmatmul.mubr.f32.gmra.mxu0 %v236
        %v415 = vpop.f32.mrf.mxu0
        %v416 = vadd.f32 0.0, %v415
        %v417 = vpop.f32.mrf.mxu0
        %418 = vmatprep.mubr.f32.mxu0 0.0
        %419 = vmatmul.mubr.f32.gmra.mxu0 %v239
        %v420 = vpop.f32.mrf.mxu0
        %v421 = vadd.f32 0.0, %v420
        %v422 = vpop.f32.mrf.mxu0
        %423 = vmatprep.mubr.f32.mxu0 0.0
        %424 = vmatmul.mubr.f32.gmra.mxu0 %v242
        %v425 = vpop.f32.mrf.mxu0
        %v426 = vadd.f32 0.0, %v425
        %v427 = vpop.f32.mrf.mxu0
        %428 = vdwg.mxu0
        %429 = vst [vmem:[%s137] sm:$0xff] %v311
        %430 = vst [vmem:[%s137 + $0x8] sm:$0xff] %v316
        %431 = vst [vmem:[%s137 + $0x10] sm:$0xff] %v321
        %432 = vst [vmem:[%s137 + $0x18] sm:$0xff] %v326
        %433 = vst [vmem:[%s137 + $0x20] sm:$0xff] %v331
        %434 = vst [vmem:[%s137 + $0x28] sm:$0xff] %v336
        %435 = vst [vmem:[%s137 + $0x30] sm:$0xff] %v341
        %436 = vst [vmem:[%s137 + $0x38] sm:$0xff] %v346
        %437 = vst [vmem:[%s137 + $0x40] sm:$0xff] %v351
        %438 = vst [vmem:[%s137 + $0x48] sm:$0xff] %v356
        %439 = vst [vmem:[%s137 + $0x50] sm:$0xff] %v361
        %440 = vst [vmem:[%s137 + $0x58] sm:$0xff] %v366
        %441 = vst [vmem:[%s137 + $0x60] sm:$0xff] %v371
        %442 = vst [vmem:[%s137 + $0x68] sm:$0xff] %v376
        %443 = vst [vmem:[%s137 + $0x70] sm:$0xff] %v381
        %444 = vst [vmem:[%s137 + $0x78] sm:$0xff] %v386
        %445 = vst [vmem:[%s137 + $0x80] sm:$0xff] %v391
        %446 = vst [vmem:[%s137 + $0x88] sm:$0xff] %v396
        %447 = vst [vmem:[%s137 + $0x90] sm:$0xff] %v401
        %448 = vst [vmem:[%s137 + $0x98] sm:$0xff] %v406
        %449 = vst [vmem:[%s137 + $0xa0] sm:$0xff] %v411
        %450 = vst [vmem:[%s137 + $0xa8] sm:$0xff] %v416
        %451 = vst [vmem:[%s137 + $0xb0] sm:$0xff] %v421
        %452 = vst [vmem:[%s137 + $0xb8] sm:$0xff] %v426
        %s453 = sand.u32 %s71, 1
        %s454 = scalar_lea.sflag [#allocation3], %s453
        %s455 = sand.u32 %s71, 1
        %s456 = smul.addr %s455, 192
        %s457 = scalar_lea.vmem [#allocation2], %s456
        // Predicated region
        $region29: #{tpu_custom_call.1} parent=27 // pred_check
          %p458 = pneg %p81
        $region30: #{tpu_custom_call.1} parent=27 // pred_check_branch
          %460 = sbr.rel (%p458) target = $region32
        $region31: #{tpu_custom_call.1} parent=27 // pred_region
          %s461 = smul.u32 24, %s16
          %s463 = ssub.s32 3072, 3072
          %464 = vsyncadd %s454, %s463
          %s465 = smul.addr %s461, 128
          %s466 = scalar_lea.hbm %s2, %s465
          %s467 = sshll.u32 %s457, 4
          %s468 = int_to_ptr.vmem [resolvable:$true] %s467
          %473 = dma.vmem_to_hbm [thread:$0]  %s468, 3072, %s466, %s454, 128, 128, 8
        $region32: #{tpu_custom_call.1} parent=27 // pred_fallthru
          _
      $region28: #{tpu_custom_call.1} parent=5 // pred_fallthru
        _
      %p474 = scmp.le.s32.totalorder 2, %s11
      // Predicated region
      $region33: #{tpu_custom_call.1} parent=5 // pred_check
        %p475 = pneg %p474
      $region34: #{tpu_custom_call.1} parent=5 // pred_check_branch
        %477 = sbr.rel (%p475) target = $region36
      $region35: #{tpu_custom_call.1} parent=5 // pred_region
        %s478 = ssub.s32 %s11, 2
        // Predicated region
        $region37: #{tpu_custom_call.1} parent=35 // pred_check
          %p479 = pneg %p87
        $region38: #{tpu_custom_call.1} parent=35 // pred_check_branch
          %481 = sbr.rel (%p479) target = $region40
        $region39: #{tpu_custom_call.1} parent=35 // pred_region
          %s482 = sand.u32 %s72, 1
          %s483 = scalar_lea.sflag [#allocation3], %s482
          %s484 = sand.u32 %s72, 1
          %s485 = smul.addr %s484, 192
          %s486 = scalar_lea.vmem [#allocation2], %s485
          %487 = dma.done %s483, 3072
        $region40: #{tpu_custom_call.1} parent=35 // pred_fallthru
          _
      $region36: #{tpu_custom_call.1} parent=5 // pred_fallthru
        _
    $region6: #{tpu_custom_call.1} parent=1 // loop_footer
      %s15 = sadd.s32 1, %s11
    $region7: #{tpu_custom_call.1} parent=1 // loop_footer_branch
      %10 = sbr.rel target = $region3
    $region8: #{tpu_custom_call.1} parent=1 // loop_exit
      _
    %488 = vsyncpa [#allocation3], 1
    %s489 = scalar_lea.sflag [#allocation3], 1
    %490 = vsyncpa %s489, 1

</llo_original>
